<compile_context>
chip_gen: v7x
topology: tpu7x:2x2x1
jax: 0.10.0
libtpu: 0.0.40
codegen_flags: <defaults>
</compile_context>

<pallas_src>
import jax
import jax.numpy as jnp
from jax.experimental import pallas as pl
from jax.experimental.pallas import tpu as pltpu


def _round_up(x, m):
    return ((x + m - 1) // m) * m


def ncf_kernel(u_idx_ref, i_idx_ref,            # (1, TB) int32 index tiles (VMEM)
               emb_ut_ref, emb_it_ref,          # (D, U_pad) / (D, I_pad) resident tables
               w1t_ref, b1_ref,                 # (h1, 2D), (h1, 1)
               w2t_ref, b2_ref,                 # (h2, h1), (h2, 1)
               w3_ref, b3_ref,                  # (h2, 1), SMEM scalar bias
               out_ref):                        # (1, TB) lane-dense output tile
    tb = out_ref.shape[1]
    n_users = emb_ut_ref.shape[1]
    n_items = emb_it_ref.shape[1]

    u_idx = u_idx_ref[...]                      # (1, tb) int32
    i_idx = i_idx_ref[...]                      # (1, tb) int32

    # ---- fused embedding gather: one-hot (vocab, tb) built in-register,
    #      contracted against the VMEM-resident transposed tables on the MXU.
    row_u = jax.lax.broadcasted_iota(jnp.int32, (n_users, tb), 0)
    row_i = jax.lax.broadcasted_iota(jnp.int32, (n_items, tb), 0)
    onehot_u = (row_u == u_idx).astype(jnp.float32)        # (U_pad, tb)
    onehot_i = (row_i == i_idx).astype(jnp.float32)        # (I_pad, tb)

    x_u = jnp.dot(emb_ut_ref[...], onehot_u,
                  preferred_element_type=jnp.float32)      # (D, tb)
    x_i = jnp.dot(emb_it_ref[...], onehot_i,
                  preferred_element_type=jnp.float32)      # (D, tb)
    x = jnp.concatenate([x_u, x_i], axis=0)                # (2D, tb)

    # ---- MLP, batch in lanes: fc1 as ONE matmul over the concat dim.
    h = jnp.dot(w1t_ref[...], x, preferred_element_type=jnp.float32) + b1_ref[...]
    h = jnp.maximum(h, 0.0)                                             # (h1, tb)
    h = jnp.dot(w2t_ref[...], h, preferred_element_type=jnp.float32) + b2_ref[...]
    h = jnp.maximum(h, 0.0)                                             # (h2, tb)
    # fc3: single output unit -> VPU multiply + sublane reduce (MXU would idle).
    y = jnp.sum(h * w3_ref[...], axis=0, keepdims=True) + b3_ref[0]     # (1, tb)
    out_ref[...] = jnp.maximum(y, 0.0)                                  # final ReLU


def init_ncf_params(key, num_users, num_items, embedding_dim):
    d = embedding_dim
    h1, h2 = d // 2, d // 4
    ks = jax.random.split(key, 8)

    def uniform(k, shape, fan_in):
        bound = 1.0 / jnp.sqrt(jnp.float32(fan_in))
        return jax.random.uniform(k, shape, jnp.float32, -bound, bound)

    return {
        # nn.Embedding default init: N(0, 1)
        "emb_user": jax.random.normal(ks[0], (num_users, d), jnp.float32),
        "emb_item": jax.random.normal(ks[1], (num_items, d), jnp.float32),
        # nn.Linear default init: U(-1/sqrt(fan_in), 1/sqrt(fan_in))
        "w1": uniform(ks[2], (2 * d, h1), 2 * d),
        "b1": uniform(ks[3], (h1,), 2 * d),
        "w2": uniform(ks[4], (h1, h2), h1),
        "b2": uniform(ks[5], (h2,), h1),
        "w3": uniform(ks[6], (h2, 1), h2),
        "b3": uniform(ks[7], (1,), h2),
    }


def ncf_forward(params, user_indices, item_indices, *, block_b=2048):
    emb_user, emb_item = params["emb_user"], params["emb_item"]
    num_users, D = emb_user.shape
    num_items = emb_item.shape[0]
    w1, b1 = params["w1"], params["b1"]
    w2, b2 = params["w2"], params["b2"]
    w3, b3 = params["w3"], params["b3"]
    h1, h2 = w1.shape[1], w2.shape[1]

    B = user_indices.shape[0]
    # Batch tile: multiple of 128 so index/output blocks are lane-dense.
    tb = min(_round_up(block_b, 128), _round_up(B, 128))
    b_pad = _round_up(B, tb)
    num_tiles = b_pad // tb
    pad = b_pad - B

    u_idx = jnp.pad(user_indices.astype(jnp.int32), (0, pad)).reshape(num_tiles, tb)
    i_idx = jnp.pad(item_indices.astype(jnp.int32), (0, pad)).reshape(num_tiles, tb)

    # Pre-transpose / pad params once (tiny XLA ops) so the kernel runs
    # batch-in-lanes.  Table rows padded to a lane-friendly multiple of 128;
    # padded rows are never selected by any one-hot column.
    u_rows = _round_up(num_users, 128)
    i_rows = _round_up(num_items, 128)
    emb_ut = jnp.pad(emb_user, ((0, u_rows - num_users), (0, 0))).T   # (D, U_pad)
    emb_it = jnp.pad(emb_item, ((0, i_rows - num_items), (0, 0))).T   # (D, I_pad)
    w1t = w1.T                                                        # (h1, 2D)
    w2t = w2.T                                                        # (h2, h1)
    b1c = b1.reshape(h1, 1)
    b2c = b2.reshape(h2, 1)
    w3c = w3.reshape(h2, 1)
    b3s = b3.reshape(1)

    def resident(shape):                       # same (only) block every tile
        return pl.BlockSpec(shape, lambda b: (0, 0))

    # Rough on-chip footprint: resident tables/weights + double-buffered
    # per-tile index/output blocks.  Raise scoped VMEM accordingly (v5e/v6e
    # default 16/32 MiB), but stay well under v7x's 64 MiB physical VMEM.
    resident_bytes = 4 * (D * (u_rows + i_rows) + h1 * 2 * D + h2 * h1
                          + h1 + 2 * h2)
    per_tile_bytes = 4 * 3 * tb                 # u_idx + i_idx + out blocks
    vmem_limit = int(min(100 * 2**20,
                         max(32 * 2**20, 4 * (resident_bytes + 2 * per_tile_bytes))))

    out = pl.pallas_call(
        ncf_kernel,
        out_shape=jax.ShapeDtypeStruct((num_tiles, tb), jnp.float32),
        grid=(num_tiles,),
        in_specs=[
            pl.BlockSpec((1, tb), lambda b: (b, 0)),              # user idx tile
            pl.BlockSpec((1, tb), lambda b: (b, 0)),              # item idx tile
            resident((D, u_rows)),                                # user table^T
            resident((D, i_rows)),                                # item table^T
            resident((h1, 2 * D)),                                # w1^T
            resident((h1, 1)),                                    # b1
            resident((h2, h1)),                                   # w2^T
            resident((h2, 1)),                                    # b2
            resident((h2, 1)),                                    # w3
            pl.BlockSpec(memory_space=pltpu.MemorySpace.SMEM),    # b3 scalar
        ],
        out_specs=pl.BlockSpec((1, tb), lambda b: (b, 0)),        # lane-dense out
        compiler_params=pltpu.CompilerParams(
            dimension_semantics=("parallel",),   # shard batch tiles across TCs
            vmem_limit_bytes=vmem_limit,
        ),
    )(u_idx, i_idx, emb_ut, emb_it, w1t, b1c, w2t, b2c, w3c, b3s)

    # Matches torch's output.squeeze()
    return jnp.squeeze(out.reshape(b_pad)[:B])


def ncf_reference(params, user_indices, item_indices):
    # Pure-JAX reference for correctness checking.
    u = jnp.take(params["emb_user"], user_indices, axis=0)
    i = jnp.take(params["emb_item"], item_indices, axis=0)
    v = jnp.concatenate([u, i], axis=-1)
    x = jnp.maximum(v @ params["w1"] + params["b1"], 0.0)
    x = jnp.maximum(x @ params["w2"] + params["b2"], 0.0)
    x = jnp.maximum(x @ params["w3"] + params["b3"], 0.0)
    return jnp.squeeze(x)


if __name__ == "__main__":
    num_users, num_items, embedding_dim = 50, 40, 32
    batch = 8

    key = jax.random.PRNGKey(0)
    pkey, ukey, ikey = jax.random.split(key, 3)
    params = init_ncf_params(pkey, num_users, num_items, embedding_dim)

    user_indices = jax.random.randint(ukey, (batch,), 0, num_users, dtype=jnp.int32)
    item_indices = jax.random.randint(ikey, (batch,), 0, num_items, dtype=jnp.int32)

    out = ncf_forward(params, user_indices, item_indices)
    out = jax.block_until_ready(out)

    ref = ncf_reference(params, user_indices, item_indices)
    assert out.shape == (batch,), out.shape
    assert jnp.allclose(out, ref, atol=1e-4, rtol=1e-4), (out, ref)

    print("KERNEL_OK")
</pallas_src>

<mosaic_0001>
module attributes {stable_mosaic.version = 11 : i64} {
  func.func @ncf_kernel(%arg0: i32, %arg1: memref<1x128xi32, #tpu.memory_space<vmem>>, %arg2: memref<1x128xi32, #tpu.memory_space<vmem>>, %arg3: memref<32x128xf32, #tpu.memory_space<vmem>>, %arg4: memref<32x128xf32, #tpu.memory_space<vmem>>, %arg5: memref<16x64xf32, #tpu.memory_space<vmem>>, %arg6: memref<16x1xf32, #tpu.memory_space<vmem>>, %arg7: memref<8x16xf32, #tpu.memory_space<vmem>>, %arg8: memref<8x1xf32, #tpu.memory_space<vmem>>, %arg9: memref<8x1xf32, #tpu.memory_space<vmem>>, %arg10: memref<1xf32, #tpu.memory_space<smem>>, %arg11: memref<1x128xf32, #tpu.memory_space<vmem>>) attributes {dimension_semantics = [#tpu.dimension_semantics<parallel>], iteration_bounds = array<i64: 1>, scalar_prefetch = 0 : i64, scratch_operands = 0 : i64, tpu.core_type = #tpu.core_type<tc>, window_params = [{transform_indices = @transform_0, window_bounds = array<i64: 1, 128>}, {transform_indices = @transform_1, window_bounds = array<i64: 1, 128>}, {pipeline_mode = #tpu.pipeline_mode<synchronous>, transform_indices = @transform_2, window_bounds = array<i64: 32, 128>}, {pipeline_mode = #tpu.pipeline_mode<synchronous>, transform_indices = @transform_3, window_bounds = array<i64: 32, 128>}, {pipeline_mode = #tpu.pipeline_mode<synchronous>, transform_indices = @transform_4, window_bounds = array<i64: 16, 64>}, {pipeline_mode = #tpu.pipeline_mode<synchronous>, transform_indices = @transform_5, window_bounds = array<i64: 16, 1>}, {pipeline_mode = #tpu.pipeline_mode<synchronous>, transform_indices = @transform_6, window_bounds = array<i64: 8, 16>}, {pipeline_mode = #tpu.pipeline_mode<synchronous>, transform_indices = @transform_7, window_bounds = array<i64: 8, 1>}, {pipeline_mode = #tpu.pipeline_mode<synchronous>, transform_indices = @transform_8, window_bounds = array<i64: 8, 1>}, {transform_indices = @transform_9, window_bounds = array<i64: 1>}, {transform_indices = @transform_10, window_bounds = array<i64: 1, 128>}]} {
    %c0 = arith.constant 0 : index
    %c0_0 = arith.constant 0 : index
    %0 = vector.load %arg1[%c0, %c0_0] : memref<1x128xi32, #tpu.memory_space<vmem>>, vector<1x128xi32>
    %c0_1 = arith.constant 0 : index
    %c0_2 = arith.constant 0 : index
    %1 = vector.load %arg2[%c0_1, %c0_2] : memref<1x128xi32, #tpu.memory_space<vmem>>, vector<1x128xi32>
    %2 = tpu.iota {dimensions = array<i32: 0>} : vector<128x128xi32>
    %3 = tpu.iota {dimensions = array<i32: 0>} : vector<128x128xi32>
    %4 = vector.broadcast %0 : vector<1x128xi32> to vector<128x128xi32>
    %5 = arith.cmpi eq, %2, %4 : vector<128x128xi32>
    %6 = arith.extui %5 : vector<128x128xi1> to vector<128x128xi32>
    %7 = arith.sitofp %6 : vector<128x128xi32> to vector<128x128xf32>
    %8 = vector.broadcast %1 : vector<1x128xi32> to vector<128x128xi32>
    %9 = arith.cmpi eq, %3, %8 : vector<128x128xi32>
    %10 = arith.extui %9 : vector<128x128xi1> to vector<128x128xi32>
    %11 = arith.sitofp %10 : vector<128x128xi32> to vector<128x128xf32>
    %c0_3 = arith.constant 0 : index
    %c0_4 = arith.constant 0 : index
    %12 = vector.load %arg3[%c0_3, %c0_4] : memref<32x128xf32, #tpu.memory_space<vmem>>, vector<32x128xf32>
    %cst = arith.constant dense<0.000000e+00> : vector<32x128xf32>
    %13 = tpu.matmul %12, %7, %cst {dimension_numbers = #tpu.dot_dimension_numbers<[1], [0], [0], [1], [0, 0, 1, 1], [], []>} : vector<32x128xf32>, vector<128x128xf32>, vector<32x128xf32> -> vector<32x128xf32>
    %c0_5 = arith.constant 0 : index
    %c0_6 = arith.constant 0 : index
    %14 = vector.load %arg4[%c0_5, %c0_6] : memref<32x128xf32, #tpu.memory_space<vmem>>, vector<32x128xf32>
    %cst_7 = arith.constant dense<0.000000e+00> : vector<32x128xf32>
    %15 = tpu.matmul %14, %11, %cst_7 {dimension_numbers = #tpu.dot_dimension_numbers<[1], [0], [0], [1], [0, 0, 1, 1], [], []>} : vector<32x128xf32>, vector<128x128xf32>, vector<32x128xf32> -> vector<32x128xf32>
    %16 = tpu.concatenate %13, %15 in 0 : vector<32x128xf32>, vector<32x128xf32> -> vector<64x128xf32>
    %c0_8 = arith.constant 0 : index
    %c0_9 = arith.constant 0 : index
    %17 = vector.load %arg5[%c0_8, %c0_9] : memref<16x64xf32, #tpu.memory_space<vmem>>, vector<16x64xf32>
    %cst_10 = arith.constant dense<0.000000e+00> : vector<16x128xf32>
    %18 = tpu.matmul %17, %16, %cst_10 {dimension_numbers = #tpu.dot_dimension_numbers<[1], [0], [0], [1], [0, 0, 1, 1], [], []>} : vector<16x64xf32>, vector<64x128xf32>, vector<16x128xf32> -> vector<16x128xf32>
    %c0_11 = arith.constant 0 : index
    %c0_12 = arith.constant 0 : index
    %19 = vector.load %arg6[%c0_11, %c0_12] : memref<16x1xf32, #tpu.memory_space<vmem>>, vector<16x1xf32>
    %20 = vector.broadcast %19 : vector<16x1xf32> to vector<16x128xf32>
    %21 = arith.addf %18, %20 : vector<16x128xf32>
    %cst_13 = arith.constant 0.000000e+00 : f32
    %22 = vector.broadcast %cst_13 : f32 to vector<16x128xf32>
    %23 = arith.maximumf %21, %22 : vector<16x128xf32>
    %c0_14 = arith.constant 0 : index
    %c0_15 = arith.constant 0 : index
    %24 = vector.load %arg7[%c0_14, %c0_15] : memref<8x16xf32, #tpu.memory_space<vmem>>, vector<8x16xf32>
    %cst_16 = arith.constant dense<0.000000e+00> : vector<8x128xf32>
    %25 = tpu.matmul %24, %23, %cst_16 {dimension_numbers = #tpu.dot_dimension_numbers<[1], [0], [0], [1], [0, 0, 1, 1], [], []>} : vector<8x16xf32>, vector<16x128xf32>, vector<8x128xf32> -> vector<8x128xf32>
    %c0_17 = arith.constant 0 : index
    %c0_18 = arith.constant 0 : index
    %26 = vector.load %arg8[%c0_17, %c0_18] : memref<8x1xf32, #tpu.memory_space<vmem>>, vector<8x1xf32>
    %27 = vector.broadcast %26 : vector<8x1xf32> to vector<8x128xf32>
    %28 = arith.addf %25, %27 : vector<8x128xf32>
    %cst_19 = arith.constant 0.000000e+00 : f32
    %29 = vector.broadcast %cst_19 : f32 to vector<8x128xf32>
    %30 = arith.maximumf %28, %29 : vector<8x128xf32>
    %c0_20 = arith.constant 0 : index
    %c0_21 = arith.constant 0 : index
    %31 = vector.load %arg9[%c0_20, %c0_21] : memref<8x1xf32, #tpu.memory_space<vmem>>, vector<8x1xf32>
    %32 = vector.broadcast %31 : vector<8x1xf32> to vector<8x128xf32>
    %33 = arith.mulf %30, %32 : vector<8x128xf32>
    %cst_22 = arith.constant dense<0.000000e+00> : vector<128xf32>
    %34 = vector.multi_reduction <add>, %33, %cst_22 [0] : vector<8x128xf32> to vector<128xf32>
    %35 = vector.shape_cast %34 : vector<128xf32> to vector<1x128xf32>
    %c0_23 = arith.constant 0 : index
    %36 = memref.load %arg10[%c0_23] : memref<1xf32, #tpu.memory_space<smem>>
    %37 = vector.broadcast %36 : f32 to vector<1x128xf32>
    %38 = arith.addf %35, %37 : vector<1x128xf32>
    %cst_24 = arith.constant 0.000000e+00 : f32
    %39 = vector.broadcast %cst_24 : f32 to vector<1x128xf32>
    %40 = arith.maximumf %38, %39 : vector<1x128xf32>
    %c0_25 = arith.constant 0 : index
    %c0_26 = arith.constant 0 : index
    %41 = vector.load %arg11[%c0_25, %c0_26] : memref<1x128xf32, #tpu.memory_space<vmem>>, vector<1x128xf32>
    tpu.vector_store %arg11[%c0_25, %c0_26], %40 {strides = array<i32>} : memref<1x128xf32, #tpu.memory_space<vmem>>, vector<1x128xf32>,
    return
  }
  func.func @transform_0(%arg0: i32) -> (i32, i32) {
    %c0_i32 = arith.constant 0 : i32
    %c0_i32_0 = arith.constant 0 : i32
    return %arg0, %c0_i32 : i32, i32
  }
  func.func @transform_1(%arg0: i32) -> (i32, i32) {
    %c0_i32 = arith.constant 0 : i32
    %c0_i32_0 = arith.constant 0 : i32
    return %arg0, %c0_i32 : i32, i32
  }
  func.func @transform_2(%arg0: i32) -> (i32, i32) {
    %c0_i32 = arith.constant 0 : i32
    %c0_i32_0 = arith.constant 0 : i32
    %c0_i32_1 = arith.constant 0 : i32
    return %c0_i32, %c0_i32_0 : i32, i32
  }
  func.func @transform_3(%arg0: i32) -> (i32, i32) {
    %c0_i32 = arith.constant 0 : i32
    %c0_i32_0 = arith.constant 0 : i32
    %c0_i32_1 = arith.constant 0 : i32
    return %c0_i32, %c0_i32_0 : i32, i32
  }
  func.func @transform_4(%arg0: i32) -> (i32, i32) {
    %c0_i32 = arith.constant 0 : i32
    %c0_i32_0 = arith.constant 0 : i32
    %c0_i32_1 = arith.constant 0 : i32
    return %c0_i32, %c0_i32_0 : i32, i32
  }
  func.func @transform_5(%arg0: i32) -> (i32, i32) {
    %c0_i32 = arith.constant 0 : i32
    %c0_i32_0 = arith.constant 0 : i32
    %c0_i32_1 = arith.constant 0 : i32
    return %c0_i32, %c0_i32_0 : i32, i32
  }
  func.func @transform_6(%arg0: i32) -> (i32, i32) {
    %c0_i32 = arith.constant 0 : i32
    %c0_i32_0 = arith.constant 0 : i32
    %c0_i32_1 = arith.constant 0 : i32
    return %c0_i32, %c0_i32_0 : i32, i32
  }
  func.func @transform_7(%arg0: i32) -> (i32, i32) {
    %c0_i32 = arith.constant 0 : i32
    %c0_i32_0 = arith.constant 0 : i32
    %c0_i32_1 = arith.constant 0 : i32
    return %c0_i32, %c0_i32_0 : i32, i32
  }
  func.func @transform_8(%arg0: i32) -> (i32, i32) {
    %c0_i32 = arith.constant 0 : i32
    %c0_i32_0 = arith.constant 0 : i32
    %c0_i32_1 = arith.constant 0 : i32
    return %c0_i32, %c0_i32_0 : i32, i32
  }
  func.func @transform_9(%arg0: i32) -> i32 {
    %c0_i32 = arith.constant 0 : i32
    %c0_i32_0 = arith.constant 0 : i32
    return %c0_i32 : i32
  }
  func.func @transform_10(%arg0: i32) -> (i32, i32) {
    %c0_i32 = arith.constant 0 : i32
    %c0_i32_0 = arith.constant 0 : i32
    return %arg0, %c0_i32 : i32, i32
  }
}

</mosaic_0001>

<llo_original>
// kernel: tpu_custom_call.1
$region0: #{tpu_custom_call.1}
  #allocation0 [shape = 'u32[]', space=smem, size = 0x4, offset = 0x4, fixed_abs, tag = 'smem constant byte address 0x4 - core index']
  #allocation1 [shape = 'u32[144,128]{1,0:T(1,128)}', space=vmem, size = 0x12000, scoped, tag = 'internal scratch']
  #allocation2 [shape = 'f32[1]{0:T(128)S(6)}', space=smem, size = 0x200, scoped, tag = 'scoped memory for tpu_custom_call.1']
  %s0 = inlined_call_operand.vmem [shape: s32[1,128], index: 0, kind: input, shape index: {}]
  %s1 = inlined_call_operand.hbm [shape: s32[1,128], index: 1, kind: input, shape index: {}]
  %s2 = inlined_call_operand.vmem [shape: f32[32,128], index: 2, kind: input, shape index: {}]
  %s3 = inlined_call_operand.hbm [shape: f32[32,128], index: 3, kind: input, shape index: {}]
  %s4 = inlined_call_operand.vmem [shape: f32[16,64], index: 4, kind: input, shape index: {}]
  %s5 = inlined_call_operand.vmem [shape: f32[16,1], index: 5, kind: input, shape index: {}]
  %s6 = inlined_call_operand.vmem [shape: f32[8,16], index: 6, kind: input, shape index: {}]
  %s7 = inlined_call_operand.vmem [shape: f32[8,1], index: 7, kind: input, shape index: {}]
  %s8 = inlined_call_operand.vmem [shape: f32[8,1], index: 8, kind: input, shape index: {}]
  %s9 = inlined_call_operand.<no memory space> [shape: f32[1], index: 9, kind: input, shape index: {}]
  %s10 = inlined_call_operand.hbm [shape: f32[1,128], index: 10, kind: output, shape index: {}]
  %s11 = sld [smem:[#allocation0]]
  $region58: #{tpu_custom_call.1} parent=0
    _
  %s13 = ssub.s32 1, %s11
  %s14 = scalar_select 0, %s13, %s11
  %15 = sst [smem:[#allocation2]] %s9
  $region1: #{tpu_custom_call.1} parent=0
    #allocation3 [shape = 'u8[512]{0}', space=vmem, size = 0x400, scoped, tag = 'input window, operand 1, single buffered']
    #allocation4 [shape = 's32[1]{0}', space=sflag, size = 0x4, scoped, tag = 'scoped memory for tpu_custom_call.1']
    #allocation5 [shape = 's32[1]{0}', space=sflag, size = 0x4, scoped, tag = 'scoped memory for tpu_custom_call.1']
    #allocation6 [shape = 'u8[16384]{0}', space=vmem, size = 0x4000, scoped, tag = 'input window, operand 3, single buffered']
    #allocation7 [shape = 's32[1]{0}', space=sflag, size = 0x4, scoped, tag = 'scoped memory for tpu_custom_call.1']
    #allocation8 [shape = 'u8[512]{0}', space=vmem, size = 0x400, scoped, tag = 'output window, operand 0, single buffered']
    %16 = vsyncpa [#allocation4], 0
    %17 = vsyncpa [#allocation7], 0
    %18 = vsyncpa [#allocation5], 0
    // Predicated region
    $region2: #{tpu_custom_call.1} parent=1 // pred_check
      _
    $region3: #{tpu_custom_call.1} parent=1 // pred_check_branch
      %20 = sbr.rel (0) target = $region5
    $region4: #{tpu_custom_call.1} parent=1 // pred_region
      _
    $region5: #{tpu_custom_call.1} parent=1 // pred_fallthru
      _
    // Predicated region
    $region6: #{tpu_custom_call.1} parent=1 // pred_check
      _
    $region7: #{tpu_custom_call.1} parent=1 // pred_check_branch
      %22 = sbr.rel (0) target = $region9
    $region8: #{tpu_custom_call.1} parent=1 // pred_region
      %s24 = ssub.s32 16, 16
      %25 = vsyncadd [#allocation4], %s24
      %s27 = sshll.u32 [#allocation3], 4
      %s28 = int_to_ptr.vmem [resolvable:$true] %s27
      %30 = dma.hbm_to_vmem [thread:$0]  %s1, 16, %s28, [#allocation4]
    $region9: #{tpu_custom_call.1} parent=1 // pred_fallthru
      _
    // Predicated region
    $region10: #{tpu_custom_call.1} parent=1 // pred_check
      _
    $region11: #{tpu_custom_call.1} parent=1 // pred_check_branch
      %32 = sbr.rel (0) target = $region13
    $region12: #{tpu_custom_call.1} parent=1 // pred_region
      _
    $region13: #{tpu_custom_call.1} parent=1 // pred_fallthru
      _
    // Predicated region
    $region14: #{tpu_custom_call.1} parent=1 // pred_check
      _
    $region15: #{tpu_custom_call.1} parent=1 // pred_check_branch
      %34 = sbr.rel (0) target = $region17
    $region16: #{tpu_custom_call.1} parent=1 // pred_region
      %s36 = ssub.s32 512, 512
      %37 = vsyncadd [#allocation7], %s36
      %s38 = sshll.u32 [#allocation6], 4
      %s39 = int_to_ptr.vmem [resolvable:$true] %s38
      %44 = dma.hbm_to_vmem [thread:$0]  %s3, 512, %s39, [#allocation7], 128, 128, 8
    $region17: #{tpu_custom_call.1} parent=1 // pred_fallthru
      _
    // Predicated region
    $region18: #{tpu_custom_call.1} parent=1 // pred_check
      _
    $region19: #{tpu_custom_call.1} parent=1 // pred_check_branch
      %46 = sbr.rel (0) target = $region21
    $region20: #{tpu_custom_call.1} parent=1 // pred_region
      _
    $region21: #{tpu_custom_call.1} parent=1 // pred_fallthru
      _
    // Predicated region
    $region22: #{tpu_custom_call.1} parent=1 // pred_check
      _
    $region23: #{tpu_custom_call.1} parent=1 // pred_check_branch
      %48 = sbr.rel (0) target = $region25
    $region24: #{tpu_custom_call.1} parent=1 // pred_region
      _
    $region25: #{tpu_custom_call.1} parent=1 // pred_fallthru
      _
    // Predicated region
    $region26: #{tpu_custom_call.1} parent=1 // pred_check
      _
    $region27: #{tpu_custom_call.1} parent=1 // pred_check_branch
      %50 = sbr.rel (0) target = $region29
    $region28: #{tpu_custom_call.1} parent=1 // pred_region
      _
    $region29: #{tpu_custom_call.1} parent=1 // pred_fallthru
      _
    // Predicated region
    $region30: #{tpu_custom_call.1} parent=1 // pred_check
      _
    $region31: #{tpu_custom_call.1} parent=1 // pred_check_branch
      %52 = sbr.rel (0) target = $region33
    $region32: #{tpu_custom_call.1} parent=1 // pred_region
      _
    $region33: #{tpu_custom_call.1} parent=1 // pred_fallthru
      _
    // Predicated region
    $region34: #{tpu_custom_call.1} parent=1 // pred_check
      _
    $region35: #{tpu_custom_call.1} parent=1 // pred_check_branch
      %54 = sbr.rel (0) target = $region37
    $region36: #{tpu_custom_call.1} parent=1 // pred_region
      _
    $region37: #{tpu_custom_call.1} parent=1 // pred_fallthru
      _
    // Predicated region
    $region38: #{tpu_custom_call.1} parent=1 // pred_check
      _
    $region39: #{tpu_custom_call.1} parent=1 // pred_check_branch
      %56 = sbr.rel (0) target = $region41
    $region40: #{tpu_custom_call.1} parent=1 // pred_region
      _
    $region41: #{tpu_custom_call.1} parent=1 // pred_fallthru
      _
    // Predicated region
    $region42: #{tpu_custom_call.1} parent=1 // pred_check
      _
    $region43: #{tpu_custom_call.1} parent=1 // pred_check_branch
      %58 = sbr.rel (0) target = $region45
    $region44: #{tpu_custom_call.1} parent=1 // pred_region
      %59 = dma.done [#allocation4], 16
    $region45: #{tpu_custom_call.1} parent=1 // pred_fallthru
      _
    // Predicated region
    $region46: #{tpu_custom_call.1} parent=1 // pred_check
      _
    $region47: #{tpu_custom_call.1} parent=1 // pred_check_branch
      %61 = sbr.rel (0) target = $region49
    $region48: #{tpu_custom_call.1} parent=1 // pred_region
      %62 = dma.done [#allocation7], 512
    $region49: #{tpu_custom_call.1} parent=1 // pred_fallthru
      _
    %v63 = vld [vmem:[%s0] sm:$0x1]
    %v64 = vld [vmem:[#allocation3] sm:$0x1]
    %v65 = vlaneseq
    %v66 = vshrl.u32 %v65, 7
    %v67 = vadd.s32 %v66, 8
    %v68 = vadd.s32 %v66, 16
    %v69 = vadd.s32 %v66, 24
    %v70 = vadd.s32 %v66, 32
    %v71 = vadd.s32 %v66, 40
    %v72 = vadd.s32 %v66, 48
    %v73 = vadd.s32 %v66, 56
    %v74 = vadd.s32 %v66, 64
    %v75 = vadd.s32 %v66, 72
    %v76 = vadd.s32 %v66, 80
    %v77 = vadd.s32 %v66, 88
    %v78 = vadd.s32 %v66, 96
    %v79 = vadd.s32 %v66, 104
    %v80 = vadd.s32 %v66, 112
    %v81 = vadd.s32 %v66, 120
    %v82 = vlaneseq
    %v83 = vshrl.u32 %v82, 7
    %v84 = vsub.s32 0, %v83
    %v85 = vrot.slane %v63, %v84
    %vm86 = vcmp.eq.s32.totalorder %v66, %v85
    %vm87 = vcmp.eq.s32.totalorder %v67, %v85
    %vm88 = vcmp.eq.s32.totalorder %v68, %v85
    %vm89 = vcmp.eq.s32.totalorder %v69, %v85
    %vm90 = vcmp.eq.s32.totalorder %v70, %v85
    %vm91 = vcmp.eq.s32.totalorder %v71, %v85
    %vm92 = vcmp.eq.s32.totalorder %v72, %v85
    %vm93 = vcmp.eq.s32.totalorder %v73, %v85
    %vm94 = vcmp.eq.s32.totalorder %v74, %v85
    %vm95 = vcmp.eq.s32.totalorder %v75, %v85
    %vm96 = vcmp.eq.s32.totalorder %v76, %v85
    %vm97 = vcmp.eq.s32.totalorder %v77, %v85
    %vm98 = vcmp.eq.s32.totalorder %v78, %v85
    %vm99 = vcmp.eq.s32.totalorder %v79, %v85
    %vm100 = vcmp.eq.s32.totalorder %v80, %v85
    %vm101 = vcmp.eq.s32.totalorder %v81, %v85
    %v102 = vsel %vm86, 1, 0
    %v103 = vsel %vm87, 1, 0
    %v104 = vsel %vm88, 1, 0
    %v105 = vsel %vm89, 1, 0
    %v106 = vsel %vm90, 1, 0
    %v107 = vsel %vm91, 1, 0
    %v108 = vsel %vm92, 1, 0
    %v109 = vsel %vm93, 1, 0
    %v110 = vsel %vm94, 1, 0
    %v111 = vsel %vm95, 1, 0
    %v112 = vsel %vm96, 1, 0
    %v113 = vsel %vm97, 1, 0
    %v114 = vsel %vm98, 1, 0
    %v115 = vsel %vm99, 1, 0
    %v116 = vsel %vm100, 1, 0
    %v117 = vsel %vm101, 1, 0
    %v118 = vcvt.s32.f32 %v102
    %v119 = vcvt.s32.f32 %v103
    %v120 = vcvt.s32.f32 %v104
    %v121 = vcvt.s32.f32 %v105
    %v122 = vcvt.s32.f32 %v106
    %v123 = vcvt.s32.f32 %v107
    %v124 = vcvt.s32.f32 %v108
    %v125 = vcvt.s32.f32 %v109
    %v126 = vcvt.s32.f32 %v110
    %v127 = vcvt.s32.f32 %v111
    %v128 = vcvt.s32.f32 %v112
    %v129 = vcvt.s32.f32 %v113
    %v130 = vcvt.s32.f32 %v114
    %v131 = vcvt.s32.f32 %v115
    %v132 = vcvt.s32.f32 %v116
    %v133 = vcvt.s32.f32 %v117
    %v134 = vlaneseq
    %v135 = vshrl.u32 %v134, 7
    %v136 = vsub.s32 0, %v135
    %v137 = vrot.slane %v64, %v136
    %vm138 = vcmp.eq.s32.totalorder %v66, %v137
    %vm139 = vcmp.eq.s32.totalorder %v67, %v137
    %vm140 = vcmp.eq.s32.totalorder %v68, %v137
    %vm141 = vcmp.eq.s32.totalorder %v69, %v137
    %vm142 = vcmp.eq.s32.totalorder %v70, %v137
    %vm143 = vcmp.eq.s32.totalorder %v71, %v137
    %vm144 = vcmp.eq.s32.totalorder %v72, %v137
    %vm145 = vcmp.eq.s32.totalorder %v73, %v137
    %vm146 = vcmp.eq.s32.totalorder %v74, %v137
    %vm147 = vcmp.eq.s32.totalorder %v75, %v137
    %vm148 = vcmp.eq.s32.totalorder %v76, %v137
    %vm149 = vcmp.eq.s32.totalorder %v77, %v137
    %vm150 = vcmp.eq.s32.totalorder %v78, %v137
    %vm151 = vcmp.eq.s32.totalorder %v79, %v137
    %vm152 = vcmp.eq.s32.totalorder %v80, %v137
    %vm153 = vcmp.eq.s32.totalorder %v81, %v137
    %v154 = vsel %vm138, 1, 0
    %v155 = vsel %vm139, 1, 0
    %v156 = vsel %vm140, 1, 0
    %v157 = vsel %vm141, 1, 0
    %v158 = vsel %vm142, 1, 0
    %v159 = vsel %vm143, 1, 0
    %v160 = vsel %vm144, 1, 0
    %v161 = vsel %vm145, 1, 0
    %v162 = vsel %vm146, 1, 0
    %v163 = vsel %vm147, 1, 0
    %v164 = vsel %vm148, 1, 0
    %v165 = vsel %vm149, 1, 0
    %v166 = vsel %vm150, 1, 0
    %v167 = vsel %vm151, 1, 0
    %v168 = vsel %vm152, 1, 0
    %v169 = vsel %vm153, 1, 0
    %v170 = vcvt.s32.f32 %v154
    %v171 = vcvt.s32.f32 %v155
    %v172 = vcvt.s32.f32 %v156
    %v173 = vcvt.s32.f32 %v157
    %v174 = vcvt.s32.f32 %v158
    %v175 = vcvt.s32.f32 %v159
    %v176 = vcvt.s32.f32 %v160
    %v177 = vcvt.s32.f32 %v161
    %v178 = vcvt.s32.f32 %v162
    %v179 = vcvt.s32.f32 %v163
    %v180 = vcvt.s32.f32 %v164
    %v181 = vcvt.s32.f32 %v165
    %v182 = vcvt.s32.f32 %v166
    %v183 = vcvt.s32.f32 %v167
    %v184 = vcvt.s32.f32 %v168
    %v185 = vcvt.s32.f32 %v169
    %v186 = vld [vmem:[%s2] sm:$0xff]
    %v187 = vld [vmem:[%s2 + $0x8] sm:$0xff]
    %v188 = vld [vmem:[%s2 + $0x10] sm:$0xff]
    %v189 = vld [vmem:[%s2 + $0x18] sm:$0xff]
    %190 = vmatprep.subr.mxu0 0.0
    %191 = vmatpush1.msra.mxu0 %v118
    %192 = vmatprep.subr.mxu0 0.0
    %193 = vmatpush1.msra.mxu0 %v119
    %194 = vmatprep.subr.mxu0 0.0
    %195 = vmatpush1.msra.mxu0 %v120
    %196 = vmatprep.subr.mxu0 0.0
    %197 = vmatpush1.msra.mxu0 %v121
    %198 = vmatprep.subr.mxu0 0.0
    %199 = vmatpush1.msra.mxu0 %v122
    %200 = vmatprep.subr.mxu0 0.0
    %201 = vmatpush1.msra.mxu0 %v123
    %202 = vmatprep.subr.mxu0 0.0
    %203 = vmatpush1.msra.mxu0 %v124
    %204 = vmatprep.subr.mxu0 0.0
    %205 = vmatpush1.msra.mxu0 %v125
    %206 = vmatprep.subr.mxu0 0.0
    %207 = vmatpush1.msra.mxu0 %v126
    %208 = vmatprep.subr.mxu0 0.0
    %209 = vmatpush1.msra.mxu0 %v127
    %210 = vmatprep.subr.mxu0 0.0
    %211 = vmatpush1.msra.mxu0 %v128
    %212 = vmatprep.subr.mxu0 0.0
    %213 = vmatpush1.msra.mxu0 %v129
    %214 = vmatprep.subr.mxu0 0.0
    %215 = vmatpush1.msra.mxu0 %v130
    %216 = vmatprep.subr.mxu0 0.0
    %217 = vmatpush1.msra.mxu0 %v131
    %218 = vmatprep.subr.mxu0 0.0
    %219 = vmatpush1.msra.mxu0 %v132
    %220 = vmatprep.subr.mxu0 0.0
    %221 = vmatpush1.msra.mxu0 %v133
    %222 = vmatprep.subr.mxu0 0.0
    %223 = vmatpush1.msra.mxu0 0.0
    %224 = vmatprep.subr.mxu0 0.0
    %225 = vmatpush1.msra.mxu0 0.0
    %226 = vmatprep.subr.mxu0 0.0
    %227 = vmatpush1.msra.mxu0 0.0
    %228 = vmatprep.subr.mxu0 0.0
    %229 = vmatpush1.msra.mxu0 0.0
    %230 = vmatprep.subr.mxu0 0.0
    %231 = vmatpush1.msra.mxu0 0.0
    %232 = vmatprep.subr.mxu0 0.0
    %233 = vmatpush1.msra.mxu0 0.0
    %234 = vmatprep.subr.mxu0 0.0
    %235 = vmatpush1.msra.mxu0 0.0
    %236 = vmatprep.subr.mxu0 0.0
    %237 = vmatpush1.msra.mxu0 0.0
    %238 = vmatprep.subr.mxu0 0.0
    %239 = vmatpush1.msra.mxu0 0.0
    %240 = vmatprep.subr.mxu0 0.0
    %241 = vmatpush1.msra.mxu0 0.0
    %242 = vmatprep.subr.mxu0 0.0
    %243 = vmatpush1.msra.mxu0 0.0
    %244 = vmatprep.subr.mxu0 0.0
    %245 = vmatpush1.msra.mxu0 0.0
    %246 = vmatprep.subr.mxu0 0.0
    %247 = vmatpush1.msra.mxu0 0.0
    %248 = vmatprep.subr.mxu0 0.0
    %249 = vmatpush1.msra.mxu0 0.0
    %250 = vmatprep.subr.mxu0 0.0
    %251 = vmatpush1.msra.mxu0 0.0
    %252 = vmatprep.subr.mxu0 0.0
    %253 = vmatpush1.msra.mxu0 0.0
    %254 = vmatprep.mubr.f32.mxu0 0.0
    %255 = vmatmul.mubr.f32.gmra.mrb[0].mxu0 %v186
    %v256 = vpop.f32.mrb[0].mxu0
    %v257 = vadd.f32 0.0, %v256
    %v258 = vpop.f32.mrb[0].mxu0
    %259 = vmatprep.mubr.f32.mxu0 0.0
    %260 = vmatmul.mubr.f32.gmra.mrb[0].mxu0 %v187
    %v261 = vpop.f32.mrb[0].mxu0
    %v262 = vadd.f32 0.0, %v261
    %v263 = vpop.f32.mrb[0].mxu0
    %264 = vmatprep.mubr.f32.mxu0 0.0
    %265 = vmatmul.mubr.f32.gmra.mrb[0].mxu0 %v188
    %v266 = vpop.f32.mrb[0].mxu0
    %v267 = vadd.f32 0.0, %v266
    %v268 = vpop.f32.mrb[0].mxu0
    %269 = vmatprep.mubr.f32.mxu0 0.0
    %270 = vmatmul.mubr.f32.gmra.mrb[0].mxu0 %v189
    %v271 = vpop.f32.mrb[0].mxu0
    %v272 = vadd.f32 0.0, %v271
    %v273 = vpop.f32.mrb[0].mxu0
    %274 = vdwg.mxu0
    %v275 = vld [vmem:[#allocation6] sm:$0xff]
    %v276 = vld [vmem:[#allocation6 + $0x8] sm:$0xff]
    %v277 = vld [vmem:[#allocation6 + $0x10] sm:$0xff]
    %v278 = vld [vmem:[#allocation6 + $0x18] sm:$0xff]
    %279 = vmatprep.subr.mxu0 0.0
    %280 = vmatpush1.msra.mxu0 %v170
    %281 = vmatprep.subr.mxu0 0.0
    %282 = vmatpush1.msra.mxu0 %v171
    %283 = vmatprep.subr.mxu0 0.0
    %284 = vmatpush1.msra.mxu0 %v172
    %285 = vmatprep.subr.mxu0 0.0
    %286 = vmatpush1.msra.mxu0 %v173
    %287 = vmatprep.subr.mxu0 0.0
    %288 = vmatpush1.msra.mxu0 %v174
    %289 = vmatprep.subr.mxu0 0.0
    %290 = vmatpush1.msra.mxu0 %v175
    %291 = vmatprep.subr.mxu0 0.0
    %292 = vmatpush1.msra.mxu0 %v176
    %293 = vmatprep.subr.mxu0 0.0
    %294 = vmatpush1.msra.mxu0 %v177
    %295 = vmatprep.subr.mxu0 0.0
    %296 = vmatpush1.msra.mxu0 %v178
    %297 = vmatprep.subr.mxu0 0.0
    %298 = vmatpush1.msra.mxu0 %v179
    %299 = vmatprep.subr.mxu0 0.0
    %300 = vmatpush1.msra.mxu0 %v180
    %301 = vmatprep.subr.mxu0 0.0
    %302 = vmatpush1.msra.mxu0 %v181
    %303 = vmatprep.subr.mxu0 0.0
    %304 = vmatpush1.msra.mxu0 %v182
    %305 = vmatprep.subr.mxu0 0.0
    %306 = vmatpush1.msra.mxu0 %v183
    %307 = vmatprep.subr.mxu0 0.0
    %308 = vmatpush1.msra.mxu0 %v184
    %309 = vmatprep.subr.mxu0 0.0
    %310 = vmatpush1.msra.mxu0 %v185
    %311 = vmatprep.subr.mxu0 0.0
    %312 = vmatpush1.msra.mxu0 0.0
    %313 = vmatprep.subr.mxu0 0.0
    %314 = vmatpush1.msra.mxu0 0.0
    %315 = vmatprep.subr.mxu0 0.0
    %316 = vmatpush1.msra.mxu0 0.0
    %317 = vmatprep.subr.mxu0 0.0
    %318 = vmatpush1.msra.mxu0 0.0
    %319 = vmatprep.subr.mxu0 0.0
    %320 = vmatpush1.msra.mxu0 0.0
    %321 = vmatprep.subr.mxu0 0.0
    %322 = vmatpush1.msra.mxu0 0.0
    %323 = vmatprep.subr.mxu0 0.0
    %324 = vmatpush1.msra.mxu0 0.0
    %325 = vmatprep.subr.mxu0 0.0
    %326 = vmatpush1.msra.mxu0 0.0
    %327 = vmatprep.subr.mxu0 0.0
    %328 = vmatpush1.msra.mxu0 0.0
    %329 = vmatprep.subr.mxu0 0.0
    %330 = vmatpush1.msra.mxu0 0.0
    %331 = vmatprep.subr.mxu0 0.0
    %332 = vmatpush1.msra.mxu0 0.0
    %333 = vmatprep.subr.mxu0 0.0
    %334 = vmatpush1.msra.mxu0 0.0
    %335 = vmatprep.subr.mxu0 0.0
    %336 = vmatpush1.msra.mxu0 0.0
    %337 = vmatprep.subr.mxu0 0.0
    %338 = vmatpush1.msra.mxu0 0.0
    %339 = vmatprep.subr.mxu0 0.0
    %340 = vmatpush1.msra.mxu0 0.0
    %341 = vmatprep.subr.mxu0 0.0
    %342 = vmatpush1.msra.mxu0 0.0
    %343 = vmatprep.mubr.f32.mxu0 0.0
    %344 = vmatmul.mubr.f32.gmra.mrb[0].mxu0 %v275
    %v345 = vpop.f32.mrb[0].mxu0
    %v346 = vadd.f32 0.0, %v345
    %v347 = vpop.f32.mrb[0].mxu0
    %348 = vmatprep.mubr.f32.mxu0 0.0
    %349 = vmatmul.mubr.f32.gmra.mrb[0].mxu0 %v276
    %v350 = vpop.f32.mrb[0].mxu0
    %v351 = vadd.f32 0.0, %v350
    %v352 = vpop.f32.mrb[0].mxu0
    %353 = vmatprep.mubr.f32.mxu0 0.0
    %354 = vmatmul.mubr.f32.gmra.mrb[0].mxu0 %v277
    %v355 = vpop.f32.mrb[0].mxu0
    %v356 = vadd.f32 0.0, %v355
    %v357 = vpop.f32.mrb[0].mxu0
    %358 = vmatprep.mubr.f32.mxu0 0.0
    %359 = vmatmul.mubr.f32.gmra.mrb[0].mxu0 %v278
    %v360 = vpop.f32.mrb[0].mxu0
    %v361 = vadd.f32 0.0, %v360
    %v362 = vpop.f32.mrb[0].mxu0
    %363 = vdwg.mxu0
    %v364 = vld [vmem:[%s4] sm:$0xff]
    %v365 = vld [vmem:[%s4 + $0x8] sm:$0xff]
    %v366 = vld [vmem:[%s5] sm:$0xff]
    %v367 = vld [vmem:[%s5 + $0x8] sm:$0xff]
    %369 = vset.pattern.permute.xlu0 0
    %370 = vperm.xlu0 %369, %v366
    %v371 = vpop.permute.xlu0 %370
    %374 = vset.pattern.permute.xlu0 0
    %375 = vperm.xlu0 %374, %v367
    %v376 = vpop.permute.xlu0 %375
    %vm378 = vcmask 523264
    %v380 = vsel %vm378, %v364, 0
    %v383 = vsel %vm378, %v365, 0
    %385 = vmatprep.subr.mxu0 0.0
    %386 = vmatpush1.msra.mxu0 %v257
    %387 = vmatprep.subr.mxu0 0.0
    %388 = vmatpush1.msra.mxu0 %v262
    %389 = vmatprep.subr.mxu0 0.0
    %390 = vmatpush1.msra.mxu0 %v267
    %391 = vmatprep.subr.mxu0 0.0
    %392 = vmatpush1.msra.mxu0 %v272
    %393 = vmatprep.subr.mxu0 0.0
    %394 = vmatpush1.msra.mxu0 %v346
    %395 = vmatprep.subr.mxu0 0.0
    %396 = vmatpush1.msra.mxu0 %v351
    %397 = vmatprep.subr.mxu0 0.0
    %398 = vmatpush1.msra.mxu0 %v356
    %399 = vmatprep.subr.mxu0 0.0
    %400 = vmatpush1.msra.mxu0 %v361
    %401 = vmatprep.subr.mxu0 0.0
    %402 = vmatpush1.msra.mxu0 0.0
    %403 = vmatprep.subr.mxu0 0.0
    %404 = vmatpush1.msra.mxu0 0.0
    %405 = vmatprep.subr.mxu0 0.0
    %406 = vmatpush1.msra.mxu0 0.0
    %407 = vmatprep.subr.mxu0 0.0
    %408 = vmatpush1.msra.mxu0 0.0
    %409 = vmatprep.subr.mxu0 0.0
    %410 = vmatpush1.msra.mxu0 0.0
    %411 = vmatprep.subr.mxu0 0.0
    %412 = vmatpush1.msra.mxu0 0.0
    %413 = vmatprep.subr.mxu0 0.0
    %414 = vmatpush1.msra.mxu0 0.0
    %415 = vmatprep.subr.mxu0 0.0
    %416 = vmatpush1.msra.mxu0 0.0
    %417 = vmatprep.subr.mxu0 0.0
    %418 = vmatpush1.msra.mxu0 0.0
    %419 = vmatprep.subr.mxu0 0.0
    %420 = vmatpush1.msra.mxu0 0.0
    %421 = vmatprep.subr.mxu0 0.0
    %422 = vmatpush1.msra.mxu0 0.0
    %423 = vmatprep.subr.mxu0 0.0
    %424 = vmatpush1.msra.mxu0 0.0
    %425 = vmatprep.subr.mxu0 0.0
    %426 = vmatpush1.msra.mxu0 0.0
    %427 = vmatprep.subr.mxu0 0.0
    %428 = vmatpush1.msra.mxu0 0.0
    %429 = vmatprep.subr.mxu0 0.0
    %430 = vmatpush1.msra.mxu0 0.0
    %431 = vmatprep.subr.mxu0 0.0
    %432 = vmatpush1.msra.mxu0 0.0
    %433 = vmatprep.subr.mxu0 0.0
    %434 = vmatpush1.msra.mxu0 0.0
    %435 = vmatprep.subr.mxu0 0.0
    %436 = vmatpush1.msra.mxu0 0.0
    %437 = vmatprep.subr.mxu0 0.0
    %438 = vmatpush1.msra.mxu0 0.0
    %439 = vmatprep.subr.mxu0 0.0
    %440 = vmatpush1.msra.mxu0 0.0
    %441 = vmatprep.subr.mxu0 0.0
    %442 = vmatpush1.msra.mxu0 0.0
    %443 = vmatprep.subr.mxu0 0.0
    %444 = vmatpush1.msra.mxu0 0.0
    %445 = vmatprep.subr.mxu0 0.0
    %446 = vmatpush1.msra.mxu0 0.0
    %447 = vmatprep.subr.mxu0 0.0
    %448 = vmatpush1.msra.mxu0 0.0
    %449 = vmatprep.mubr.f32.mxu0 0.0
    %450 = vmatmul.mubr.f32.gmra.mrb[0].mxu0 %v380
    %v451 = vpop.f32.mrb[0].mxu0
    %v452 = vadd.f32 %v371, %v451
    %v453 = vpop.f32.mrb[0].mxu0
    %454 = vmatprep.mubr.f32.mxu0 0.0
    %455 = vmatmul.mubr.f32.gmra.mrb[0].mxu0 %v383
    %v456 = vpop.f32.mrb[0].mxu0
    %v457 = vadd.f32 %v376, %v456
    %v458 = vpop.f32.mrb[0].mxu0
    %459 = vdwg.mxu0
    %v460 = vmax.f32 %v452, 0.0
    %v461 = vmax.f32 %v457, 0.0
    %v462 = vld [vmem:[%s6] sm:$0xff]
    %v463 = vld [vmem:[%s7] sm:$0xff]
    %465 = vset.pattern.permute.xlu0 0
    %466 = vperm.xlu0 %465, %v463
    %v467 = vpop.permute.xlu0 %466
    %vm469 = vcmask 130048
    %v471 = vsel %vm469, %v462, 0
    %473 = vmatprep.subr.mxu0 0.0
    %474 = vmatpush1.msra.mxu0 %v460
    %475 = vmatprep.subr.mxu0 0.0
    %476 = vmatpush1.msra.mxu0 %v461
    %477 = vmatprep.subr.mxu0 0.0
    %478 = vmatpush1.msra.mxu0 0.0
    %479 = vmatprep.subr.mxu0 0.0
    %480 = vmatpush1.msra.mxu0 0.0
    %481 = vmatprep.subr.mxu0 0.0
    %482 = vmatpush1.msra.mxu0 0.0
    %483 = vmatprep.subr.mxu0 0.0
    %484 = vmatpush1.msra.mxu0 0.0
    %485 = vmatprep.subr.mxu0 0.0
    %486 = vmatpush1.msra.mxu0 0.0
    %487 = vmatprep.subr.mxu0 0.0
    %488 = vmatpush1.msra.mxu0 0.0
    %489 = vmatprep.subr.mxu0 0.0
    %490 = vmatpush1.msra.mxu0 0.0
    %491 = vmatprep.subr.mxu0 0.0
    %492 = vmatpush1.msra.mxu0 0.0
    %493 = vmatprep.subr.mxu0 0.0
    %494 = vmatpush1.msra.mxu0 0.0
    %495 = vmatprep.subr.mxu0 0.0
    %496 = vmatpush1.msra.mxu0 0.0
    %497 = vmatprep.subr.mxu0 0.0
    %498 = vmatpush1.msra.mxu0 0.0
    %499 = vmatprep.subr.mxu0 0.0
    %500 = vmatpush1.msra.mxu0 0.0
    %501 = vmatprep.subr.mxu0 0.0
    %502 = vmatpush1.msra.mxu0 0.0
    %503 = vmatprep.subr.mxu0 0.0
    %504 = vmatpush1.msra.mxu0 0.0
    %505 = vmatprep.subr.mxu0 0.0
    %506 = vmatpush1.msra.mxu0 0.0
    %507 = vmatprep.subr.mxu0 0.0
    %508 = vmatpush1.msra.mxu0 0.0
    %509 = vmatprep.subr.mxu0 0.0
    %510 = vmatpush1.msra.mxu0 0.0
    %511 = vmatprep.subr.mxu0 0.0
    %512 = vmatpush1.msra.mxu0 0.0
    %513 = vmatprep.subr.mxu0 0.0
    %514 = vmatpush1.msra.mxu0 0.0
    %515 = vmatprep.subr.mxu0 0.0
    %516 = vmatpush1.msra.mxu0 0.0
    %517 = vmatprep.subr.mxu0 0.0
    %518 = vmatpush1.msra.mxu0 0.0
    %519 = vmatprep.subr.mxu0 0.0
    %520 = vmatpush1.msra.mxu0 0.0
    %521 = vmatprep.subr.mxu0 0.0
    %522 = vmatpush1.msra.mxu0 0.0
    %523 = vmatprep.subr.mxu0 0.0
    %524 = vmatpush1.msra.mxu0 0.0
    %525 = vmatprep.subr.mxu0 0.0
    %526 = vmatpush1.msra.mxu0 0.0
    %527 = vmatprep.subr.mxu0 0.0
    %528 = vmatpush1.msra.mxu0 0.0
    %529 = vmatprep.subr.mxu0 0.0
    %530 = vmatpush1.msra.mxu0 0.0
    %531 = vmatprep.subr.mxu0 0.0
    %532 = vmatpush1.msra.mxu0 0.0
    %533 = vmatprep.subr.mxu0 0.0
    %534 = vmatpush1.msra.mxu0 0.0
    %535 = vmatprep.subr.mxu0 0.0
    %536 = vmatpush1.msra.mxu0 0.0
    %537 = vmatprep.mubr.f32.mxu0 0.0
    %538 = vmatmul.mubr.f32.gmra.mrb[0].mxu0 %v471
    %v539 = vpop.f32.mrb[0].mxu0
    %v540 = vadd.f32 %v467, %v539
    %v541 = vpop.f32.mrb[0].mxu0
    %542 = vdwg.mxu0
    %v543 = vmax.f32 %v540, 0.0
    %v544 = vld [vmem:[%s8] sm:$0xff]
    %546 = vset.pattern.permute.xlu0 0
    %547 = vperm.xlu0 %546, %v544
    %v548 = vpop.permute.xlu0 %547
    %v550 = vmul.f32 %v543, %v548
    %v551 = vrot.slane %v550, 4
    %v552 = vadd.f32 %v550, %v551
    %v553 = vrot.slane %v552, 2
    %v554 = vadd.f32 %v552, %v553
    %v555 = vrot.slane %v554, 1
    %v556 = vadd.f32 %v554, %v555
    %s557 = sld [smem:[#allocation2]]
    %v558 = vstv %s557
    %v559 = vadd.f32 %v556, %v558
    %v560 = vmax.f32 %v559, 0.0
    %561 = vst [vmem:[#allocation8] sm:$0x1] %v560
    // Predicated region
    $region50: #{tpu_custom_call.1} parent=1 // pred_check
      _
    $region51: #{tpu_custom_call.1} parent=1 // pred_check_branch
      %563 = sbr.rel (0) target = $region53
    $region52: #{tpu_custom_call.1} parent=1 // pred_region
      %s565 = ssub.s32 16, 16
      %566 = vsyncadd [#allocation5], %s565
      %s568 = sshll.u32 [#allocation8], 4
      %s569 = int_to_ptr.vmem [resolvable:$true] %s568
      %571 = dma.vmem_to_hbm [thread:$0]  %s569, 16, %s10, [#allocation5]
    $region53: #{tpu_custom_call.1} parent=1 // pred_fallthru
      _
    // Predicated region
    $region54: #{tpu_custom_call.1} parent=1 // pred_check
      _
    $region55: #{tpu_custom_call.1} parent=1 // pred_check_branch
      %573 = sbr.rel (0) target = $region57
    $region56: #{tpu_custom_call.1} parent=1 // pred_region
      %574 = dma.done [#allocation5], 16
    $region57: #{tpu_custom_call.1} parent=1 // pred_fallthru
      _
    %575 = vsyncpa [#allocation4], 1
    %576 = vsyncpa [#allocation7], 1
    %577 = vsyncpa [#allocation5], 1

</llo_original>
